<compile_context>
chip_gen: v5e
topology: v5e:2x2
jax: 0.10.0
libtpu: 0.0.40
codegen_flags: <defaults>
</compile_context>

<pallas_src>
import functools

import jax
import jax.numpy as jnp
from jax.experimental import pallas as pl
from jax.experimental.pallas import tpu as pltpu


# ----------------------------- activations (evaluated in f32) -----------------------------

def _gelu_new(x):
    # HF "gelu_new" tanh approximation.
    return 0.5 * x * (1.0 + jnp.tanh(0.7978845608028654 * (x + 0.044715 * x * x * x)))


def _gelu(x):
    return 0.5 * x * (1.0 + jax.lax.erf(x * 0.7071067811865476))


_ACT = {
    "relu": lambda x: jnp.maximum(x, 0.0),
    "gelu": _gelu,
    "gelu_new": _gelu_new,
    "silu": lambda x: x * (1.0 / (1.0 + jnp.exp(-x))),
}


# ----------------------------- Pallas kernels -----------------------------

def _dense_act_dense_kernel_single(x_ref, wi_ref, wo_ref, out_ref, *, act):
    """Whole d_ff in one tile: grid = (row_tiles,); weights stay resident, no accumulator."""
    h = jnp.dot(x_ref[...], wi_ref[...], preferred_element_type=jnp.float32)
    h = act(h)
    # dropout: eval-mode no-op.
    # TODO(synk): training-mode dropout (pltpu.prng_seed/prng_random_bits mask) not implemented.
    h = h.astype(wo_ref.dtype)  # mirror torch's cast to wo.weight.dtype
    out_ref[...] = jnp.dot(h, wo_ref[...],
                           preferred_element_type=jnp.float32).astype(out_ref.dtype)


def _dense_act_dense_kernel_tiled(x_ref, wi_ref, wo_ref, out_ref, acc_ref, *, act):
    """ff-tiled: grid = (row_tiles, ff_tiles); ff axis is the contraction of the 2nd matmul."""
    j = pl.program_id(1)

    h = jnp.dot(x_ref[...], wi_ref[...], preferred_element_type=jnp.float32)
    h = act(h)
    # dropout: eval-mode no-op (see TODO above).
    h = h.astype(wo_ref.dtype)
    p = jnp.dot(h, wo_ref[...], preferred_element_type=jnp.float32)

    # First ff step writes the accumulator directly (no zero-fill + RMW pass);
    # subsequent steps accumulate; last step flushes to the output tile.
    @pl.when(j == 0)
    def _():
        acc_ref[...] = p

    @pl.when(j > 0)
    def _():
        acc_ref[...] += p

    @pl.when(j == pl.num_programs(1) - 1)
    def _():
        out_ref[...] = acc_ref[...].astype(out_ref.dtype)


# ----------------------------- tiling / VMEM heuristics -----------------------------

def _vmem_capacity_bytes():
    try:
        return int(pltpu.get_tpu_info().vmem_capacity_bytes)
    except Exception:
        pass
    try:
        kind = jax.devices()[0].device_kind.lower()
        if "v7" in kind:
            return 64 << 20
    except Exception:
        pass
    return 128 << 20


def _pick_tiles(M, D, F, in_itemsize, out_itemsize, vmem_budget):
    """Generation-appropriate (tm, tf), shrunk until the working set fits VMEM."""
    big = vmem_budget >= (90 << 20)      # v5e / v6e (128 MiB physical VMEM)
    tm = 1024 if big else 512            # v7x: 64 MiB -> start at 512/512
    tf = 1024 if big else 512
    if M <= tm:
        tm = M
    if F <= tf:
        tf = F

    def working_set(a, b):
        return ((2 * a * D + 2 * D * b + 2 * b * D) * in_itemsize   # x, wi, wo (double-buffered)
                + 2 * a * D * out_itemsize                          # out (double-buffered)
                + a * D * 4)                                        # f32 accumulator

    while working_set(tm, tf) > vmem_budget:
        if tf > 256 and tf % 256 == 0:
            tf //= 2
        elif tm > 256 and tm % 256 == 0:
            tm //= 2
        else:
            break
    return tm, tf


def _largest_ff_tile(F, cap):
    """Largest multiple-of-128 divisor of F that is <= cap (falls back to F)."""
    t = (cap // 128) * 128
    while t >= 128:
        if F % t == 0:
            return t
        t -= 128
    return F


# ----------------------------- wrapper -----------------------------

def umt5_dense_act_dense(hidden, wi_t, wo_t, *, act="relu", tm=None, tf=None,
                         compute_dtype=None, single_buffer_x=False):
    """UMT5DenseActDense forward.

    hidden : (B, S, d_model)
    wi_t   : (d_model, d_ff)  == torch wi.weight.T  (y = x @ wi_t)
    wo_t   : (d_ff, d_model)  == torch wo.weight.T
    compute_dtype : optional dtype (e.g. jnp.bfloat16) to cast operands to at the
        kernel boundary — halves the weight HBM stream; f32 accumulation is kept.
    """
    B, S, D = hidden.shape
    F = wi_t.shape[1]
    assert wi_t.shape == (D, F) and wo_t.shape == (F, D)
    M = B * S

    x = hidden.reshape(M, D)
    if compute_dtype is not None:
        x = x.astype(compute_dtype)
        wi_t = wi_t.astype(compute_dtype)
        wo_t = wo_t.astype(compute_dtype)
    # Torch: activation is cast to wo.weight.dtype, so the wo output carries that dtype.
    out_dtype = wo_t.dtype
    # TODO(synk): int8 wo.weight branch (fp8/int8 weight storage + fused dequant) not implemented.

    in_itemsize = jnp.dtype(x.dtype).itemsize
    out_itemsize = jnp.dtype(out_dtype).itemsize

    cap = _vmem_capacity_bytes()
    vmem_limit = cap - (28 << 20) if cap >= (128 << 20) else max(cap - (8 << 20), 32 << 20)

    tm_auto, tf_auto = _pick_tiles(M, D, F, in_itemsize, out_itemsize,
                                   int(vmem_limit * 0.9))
    if tm is None:
        tm = tm_auto
    if tf is None:
        tf = tf_auto
    tm = min(tm, M)
    tf = min(tf, F)
    if tf < F and F % tf != 0:
        tf = _largest_ff_tile(F, tf)

    # Pad rows so arbitrary batch*seq sizes still get the full-size row tile.
    Mp = ((M + tm - 1) // tm) * tm
    if Mp != M:
        x = jnp.pad(x, ((0, Mp - M), (0, 0)))

    row_tiles = Mp // tm
    ff_tiles = F // tf

    # Advisory cost estimate for the XLA scheduler.
    flops = 4 * Mp * F * D
    transc = Mp * F if act in ("gelu", "gelu_new", "silu") else 0
    weight_stream = row_tiles if ff_tiles > 1 else 1   # weights re-streamed once per row tile
    bytes_accessed = (Mp * D * in_itemsize
                      + Mp * D * out_itemsize
                      + 2 * D * F * in_itemsize * weight_stream)
    cost = pl.CostEstimate(flops=flops, transcendentals=transc,
                           bytes_accessed=bytes_accessed)

    act_fn = _ACT[act]

    if ff_tiles == 1:
        # Weights fit a single tile: constant block index -> DMA'd from HBM once,
        # no f32 accumulator round-trip.
        cparams = pltpu.CompilerParams(
            dimension_semantics=("parallel",),
            vmem_limit_bytes=int(vmem_limit))
        out = pl.pallas_call(
            functools.partial(_dense_act_dense_kernel_single, act=act_fn),
            out_shape=jax.ShapeDtypeStruct((Mp, D), out_dtype),
            grid_spec=pltpu.PrefetchScalarGridSpec(
                num_scalar_prefetch=0,
                grid=(row_tiles,),
                in_specs=[
                    pl.BlockSpec((tm, D), lambda i: (i, 0)),   # x row tile
                    pl.BlockSpec((D, F), lambda i: (0, 0)),    # wi (resident)
                    pl.BlockSpec((F, D), lambda i: (0, 0)),    # wo (resident)
                ],
                out_specs=pl.BlockSpec((tm, D), lambda i: (i, 0)),
            ),
            compiler_params=cparams,
            cost_estimate=cost,
        )(x, wi_t, wo_t)
    else:
        cparams = pltpu.CompilerParams(
            dimension_semantics=("parallel", "arbitrary"),
            vmem_limit_bytes=int(vmem_limit))
        if single_buffer_x:
            # x block index is constant across the inner ff axis -> single-buffer it
            # to free a tm x D buffer (funds a larger tm on v7x's 64 MiB VMEM).
            x_spec = pl.BlockSpec((tm, D), lambda i, j: (i, 0),
                                  pipeline_mode=pl.Buffered(1))
        else:
            x_spec = pl.BlockSpec((tm, D), lambda i, j: (i, 0))
        out = pl.pallas_call(
            functools.partial(_dense_act_dense_kernel_tiled, act=act_fn),
            out_shape=jax.ShapeDtypeStruct((Mp, D), out_dtype),
            grid_spec=pltpu.PrefetchScalarGridSpec(
                num_scalar_prefetch=0,
                grid=(row_tiles, ff_tiles),
                in_specs=[
                    x_spec,                                          # x row tile
                    pl.BlockSpec((D, tf), lambda i, j: (0, j)),      # wi ff-column tile
                    pl.BlockSpec((tf, D), lambda i, j: (j, 0)),      # wo ff-row tile
                ],
                out_specs=pl.BlockSpec((tm, D), lambda i, j: (i, 0)),  # resident across j
                scratch_shapes=[pltpu.VMEM((tm, D), jnp.float32)],     # f32 accumulator
            ),
            compiler_params=cparams,
            cost_estimate=cost,
        )(x, wi_t, wo_t)

    if Mp != M:
        out = out[:M]
    return out.reshape(B, S, D)


# ----------------------------- Reference (pure JAX, same f32 accumulation) -----------------------------

def umt5_dense_act_dense_ref(hidden, wi_t, wo_t, act="relu"):
    B, S, D = hidden.shape
    x = hidden.reshape(B * S, D)
    h = jnp.dot(x, wi_t, preferred_element_type=jnp.float32)
    h = _ACT[act](h).astype(wo_t.dtype)
    y = jnp.dot(h, wo_t, preferred_element_type=jnp.float32).astype(wo_t.dtype)
    return y.reshape(B, S, D)


# ----------------------------- Main -----------------------------

if __name__ == "__main__":
    # Small shapes consistent with the module: batch=2, seq=8, d_model=32, d_ff=256.
    # dense_act_fn = "relu"; dropout in eval mode (no-op).
    B, S, d_model, d_ff = 2, 8, 32, 256
    act = "relu"

    key = jax.random.PRNGKey(0)
    k1, k2, k3 = jax.random.split(key, 3)

    hidden = jax.random.normal(k1, (B, S, d_model), dtype=jnp.float32)
    # nn.Linear(d_model, d_ff, bias=False): torch weight (d_ff, d_model); stored transposed.
    wi_t = jax.random.normal(k2, (d_model, d_ff), dtype=jnp.float32) * 0.05
    # nn.Linear(d_ff, d_model, bias=False): torch weight (d_model, d_ff); stored transposed.
    wo_t = jax.random.normal(k3, (d_ff, d_model), dtype=jnp.float32) * 0.05

    ref = umt5_dense_act_dense_ref(hidden, wi_t, wo_t, act=act)

    # 1) Default path: whole d_ff fits one tile -> single-tile kernel, grid (M/tm,).
    out = jax.block_until_ready(umt5_dense_act_dense(hidden, wi_t, wo_t, act=act))
    assert out.shape == (B, S, d_model)
    assert jnp.allclose(out, ref, atol=1e-5, rtol=1e-5), float(jnp.max(jnp.abs(out - ref)))

    # 2) ff-tiled accumulation path (grid (1, 2)): exercises the j==0 write / j>0 += kernel.
    out2 = jax.block_until_ready(umt5_dense_act_dense(hidden, wi_t, wo_t, act=act, tf=128))
    assert jnp.allclose(out2, ref, atol=1e-5, rtol=1e-5), float(jnp.max(jnp.abs(out2 - ref)))

    # 3) bf16 compute path (halved weight HBM stream; f32 accumulation preserved).
    out3 = jax.block_until_ready(
        umt5_dense_act_dense(hidden, wi_t, wo_t, act=act, compute_dtype=jnp.bfloat16))
    ref3 = umt5_dense_act_dense_ref(hidden.astype(jnp.bfloat16),
                                    wi_t.astype(jnp.bfloat16),
                                    wo_t.astype(jnp.bfloat16), act=act)
    assert out3.dtype == jnp.bfloat16
    diff = jnp.max(jnp.abs(out3.astype(jnp.float32) - ref3.astype(jnp.float32)))
    assert jnp.allclose(out3.astype(jnp.float32), ref3.astype(jnp.float32),
                        atol=5e-2, rtol=5e-2), float(diff)

    print("KERNEL_OK")
</pallas_src>

<mosaic_0001>
module attributes {stable_mosaic.version = 11 : i64} {
  func.func @_dense_act_dense_kernel_single(%arg0: i32, %arg1: memref<16x32xf32, #tpu.memory_space<vmem>>, %arg2: memref<32x256xf32, #tpu.memory_space<vmem>>, %arg3: memref<256x32xf32, #tpu.memory_space<vmem>>, %arg4: memref<16x32xf32, #tpu.memory_space<vmem>>) attributes {dimension_semantics = [#tpu.dimension_semantics<parallel>], iteration_bounds = array<i64: 1>, scalar_prefetch = 0 : i64, scratch_operands = 0 : i64, tpu.core_type = #tpu.core_type<tc>, window_params = [{transform_indices = @transform_0, window_bounds = array<i64: 16, 32>}, {pipeline_mode = #tpu.pipeline_mode<synchronous>, transform_indices = @transform_1, window_bounds = array<i64: 32, 256>}, {pipeline_mode = #tpu.pipeline_mode<synchronous>, transform_indices = @transform_2, window_bounds = array<i64: 256, 32>}, {transform_indices = @transform_3, window_bounds = array<i64: 16, 32>}]} {
    %c0 = arith.constant 0 : index
    %c0_0 = arith.constant 0 : index
    %0 = vector.load %arg1[%c0, %c0_0] : memref<16x32xf32, #tpu.memory_space<vmem>>, vector<16x32xf32>
    %c0_1 = arith.constant 0 : index
    %c0_2 = arith.constant 0 : index
    %1 = vector.load %arg2[%c0_1, %c0_2] : memref<32x256xf32, #tpu.memory_space<vmem>>, vector<32x256xf32>
    %cst = arith.constant dense<0.000000e+00> : vector<16x256xf32>
    %2 = tpu.matmul %0, %1, %cst {dimension_numbers = #tpu.dot_dimension_numbers<[1], [0], [0], [1], [0, 0, 1, 1], [], []>} : vector<16x32xf32>, vector<32x256xf32>, vector<16x256xf32> -> vector<16x256xf32>
    %cst_3 = arith.constant 0.000000e+00 : f32
    %3 = vector.broadcast %cst_3 : f32 to vector<16x256xf32>
    %4 = arith.maximumf %2, %3 : vector<16x256xf32>
    %c0_4 = arith.constant 0 : index
    %c0_5 = arith.constant 0 : index
    %5 = vector.load %arg3[%c0_4, %c0_5] : memref<256x32xf32, #tpu.memory_space<vmem>>, vector<256x32xf32>
    %cst_6 = arith.constant dense<0.000000e+00> : vector<16x32xf32>
    %6 = tpu.matmul %4, %5, %cst_6 {dimension_numbers = #tpu.dot_dimension_numbers<[1], [0], [0], [1], [0, 0, 1, 1], [], []>} : vector<16x256xf32>, vector<256x32xf32>, vector<16x32xf32> -> vector<16x32xf32>
    %c0_7 = arith.constant 0 : index
    %c0_8 = arith.constant 0 : index
    %7 = vector.load %arg4[%c0_7, %c0_8] : memref<16x32xf32, #tpu.memory_space<vmem>>, vector<16x32xf32>
    tpu.vector_store %arg4[%c0_7, %c0_8], %6 {strides = array<i32>} : memref<16x32xf32, #tpu.memory_space<vmem>>, vector<16x32xf32>,
    return
  }
  func.func @transform_0(%arg0: i32) -> (i32, i32) {
    %c0_i32 = arith.constant 0 : i32
    %c0_i32_0 = arith.constant 0 : i32
    return %arg0, %c0_i32 : i32, i32
  }
  func.func @transform_1(%arg0: i32) -> (i32, i32) {
    %c0_i32 = arith.constant 0 : i32
    %c0_i32_0 = arith.constant 0 : i32
    %c0_i32_1 = arith.constant 0 : i32
    return %c0_i32, %c0_i32_0 : i32, i32
  }
  func.func @transform_2(%arg0: i32) -> (i32, i32) {
    %c0_i32 = arith.constant 0 : i32
    %c0_i32_0 = arith.constant 0 : i32
    %c0_i32_1 = arith.constant 0 : i32
    return %c0_i32, %c0_i32_0 : i32, i32
  }
  func.func @transform_3(%arg0: i32) -> (i32, i32) {
    %c0_i32 = arith.constant 0 : i32
    %c0_i32_0 = arith.constant 0 : i32
    return %arg0, %c0_i32 : i32, i32
  }
}

</mosaic_0001>

<llo_original>
// kernel: tpu_custom_call.1
$region0: #{tpu_custom_call.1}
  #allocation0 [shape = 'u32[]', space=smem, size = 0x4, offset = 0x4, fixed_abs, tag = 'smem constant byte address 0x4 - core index']
  #allocation1 [shape = 'u32[72,128]{1,0:T(1,128)}', space=vmem, size = 0x9000, scoped, tag = 'internal scratch']
  %s0 = inlined_call_operand.vmem [shape: f32[16,32], index: 0, kind: input, shape index: {}]
  %s1 = inlined_call_operand.vmem [shape: f32[32,256], index: 1, kind: input, shape index: {}]
  %s2 = inlined_call_operand.vmem [shape: f32[256,32], index: 2, kind: input, shape index: {}]
  %s3 = inlined_call_operand.hbm [shape: f32[16,32], index: 3, kind: output, shape index: {}]
  %s4 = sld [smem:[#allocation0]]
  $region22: #{tpu_custom_call.1} parent=0
    _
  %s6 = ssub.s32 1, %s4
  %s7 = scalar_select 0, %s6, %s4
  $region1: #{tpu_custom_call.1} parent=0
    #allocation2 [shape = 'u8[8192]{0}', space=vmem, size = 0x2000, scoped, tag = 'output window, operand 0, single buffered']
    #allocation3 [shape = 's32[1]{0}', space=sflag, size = 0x4, scoped, tag = 'scoped memory for tpu_custom_call.1']
    %8 = vsyncpa [#allocation3], 0
    // Predicated region
    $region2: #{tpu_custom_call.1} parent=1 // pred_check
      _
    $region3: #{tpu_custom_call.1} parent=1 // pred_check_branch
      %10 = sbr.rel (0) target = $region5
    $region4: #{tpu_custom_call.1} parent=1 // pred_region
      _
    $region5: #{tpu_custom_call.1} parent=1 // pred_fallthru
      _
    // Predicated region
    $region6: #{tpu_custom_call.1} parent=1 // pred_check
      _
    $region7: #{tpu_custom_call.1} parent=1 // pred_check_branch
      %12 = sbr.rel (0) target = $region9
    $region8: #{tpu_custom_call.1} parent=1 // pred_region
      _
    $region9: #{tpu_custom_call.1} parent=1 // pred_fallthru
      _
    // Predicated region
    $region10: #{tpu_custom_call.1} parent=1 // pred_check
      _
    $region11: #{tpu_custom_call.1} parent=1 // pred_check_branch
      %14 = sbr.rel (0) target = $region13
    $region12: #{tpu_custom_call.1} parent=1 // pred_region
      _
    $region13: #{tpu_custom_call.1} parent=1 // pred_fallthru
      _
    %v15 = vld [vmem:[%s0] sm:$0xff]
    %v16 = vld [vmem:[%s0 + $0x8] sm:$0xff]
    %v17 = vld [vmem:[%s1] sm:$0xff]
    %v18 = vld [vmem:[%s1 + $0x8] sm:$0xff]
    %v19 = vld [vmem:[%s1 + $0x10] sm:$0xff]
    %v20 = vld [vmem:[%s1 + $0x18] sm:$0xff]
    %v21 = vld [vmem:[%s1 + $0x20] sm:$0xff]
    %v22 = vld [vmem:[%s1 + $0x28] sm:$0xff]
    %v23 = vld [vmem:[%s1 + $0x30] sm:$0xff]
    %v24 = vld [vmem:[%s1 + $0x38] sm:$0xff]
    %vm25 = vcmask 261120
    %v27 = vsel %vm25, %v15, 0
    %v30 = vsel %vm25, %v16, 0
    %32 = vmatpush.msra.mxu0 0.0
    %33 = vmatpush.msra.mxu0 0.0
    %34 = vmatpush.msra.mxu0 0.0
    %35 = vmatpush.msra.mxu0 0.0
    %36 = vmatpush.msra.mxu0 0.0
    %37 = vmatpush.msra.mxu0 0.0
    %38 = vmatpush.msra.mxu0 0.0
    %39 = vmatpush.msra.mxu0 0.0
    %40 = vmatpush.msra.mxu0 0.0
    %41 = vmatpush.msra.mxu0 0.0
    %42 = vmatpush.msra.mxu0 0.0
    %43 = vmatpush.msra.mxu0 0.0
    %44 = vmatpush.msra.mxu0 %v23
    %45 = vmatpush.msra.mxu0 %v21
    %46 = vmatpush.msra.mxu0 %v19
    %47 = vmatpush.msra.mxu0 %v17
    %48 = vmatmul.f32.gmra.mxu0 %v27
    %v49 = vpop.f32.mrf.mxu0
    %v50 = vadd.f32 0.0, %v49
    %51 = vmatmul.f32.gmra.mxu0 %v30
    %v52 = vpop.f32.mrf.mxu0
    %v53 = vadd.f32 0.0, %v52
    %54 = vdwg.mxu0
    %55 = vmatpush.msra.mxu0 0.0
    %56 = vmatpush.msra.mxu0 0.0
    %57 = vmatpush.msra.mxu0 0.0
    %58 = vmatpush.msra.mxu0 0.0
    %59 = vmatpush.msra.mxu0 0.0
    %60 = vmatpush.msra.mxu0 0.0
    %61 = vmatpush.msra.mxu0 0.0
    %62 = vmatpush.msra.mxu0 0.0
    %63 = vmatpush.msra.mxu0 0.0
    %64 = vmatpush.msra.mxu0 0.0
    %65 = vmatpush.msra.mxu0 0.0
    %66 = vmatpush.msra.mxu0 0.0
    %67 = vmatpush.msra.mxu0 %v24
    %68 = vmatpush.msra.mxu0 %v22
    %69 = vmatpush.msra.mxu0 %v20
    %70 = vmatpush.msra.mxu0 %v18
    %71 = vmatmul.f32.gmra.mxu0 %v27
    %v72 = vpop.f32.mrf.mxu0
    %v73 = vadd.f32 0.0, %v72
    %74 = vmatmul.f32.gmra.mxu0 %v30
    %v75 = vpop.f32.mrf.mxu0
    %v76 = vadd.f32 0.0, %v75
    %77 = vdwg.mxu0
    %v78 = vmax.f32 %v50, 0.0
    %v79 = vmax.f32 %v73, 0.0
    %v80 = vmax.f32 %v53, 0.0
    %v81 = vmax.f32 %v76, 0.0
    %v82 = vld [vmem:[%s2] sm:$0xff]
    %v83 = vld [vmem:[%s2 + $0x8] sm:$0xff]
    %v84 = vld [vmem:[%s2 + $0x10] sm:$0xff]
    %v85 = vld [vmem:[%s2 + $0x18] sm:$0xff]
    %v86 = vld [vmem:[%s2 + $0x20] sm:$0xff]
    %v87 = vld [vmem:[%s2 + $0x28] sm:$0xff]
    %v88 = vld [vmem:[%s2 + $0x30] sm:$0xff]
    %v89 = vld [vmem:[%s2 + $0x38] sm:$0xff]
    %v90 = vld [vmem:[%s2 + $0x40] sm:$0xff]
    %v91 = vld [vmem:[%s2 + $0x48] sm:$0xff]
    %v92 = vld [vmem:[%s2 + $0x50] sm:$0xff]
    %v93 = vld [vmem:[%s2 + $0x58] sm:$0xff]
    %v94 = vld [vmem:[%s2 + $0x60] sm:$0xff]
    %v95 = vld [vmem:[%s2 + $0x68] sm:$0xff]
    %v96 = vld [vmem:[%s2 + $0x70] sm:$0xff]
    %v97 = vld [vmem:[%s2 + $0x78] sm:$0xff]
    %v98 = vld [vmem:[%s2 + $0x80] sm:$0xff]
    %v99 = vld [vmem:[%s2 + $0x88] sm:$0xff]
    %v100 = vld [vmem:[%s2 + $0x90] sm:$0xff]
    %v101 = vld [vmem:[%s2 + $0x98] sm:$0xff]
    %v102 = vld [vmem:[%s2 + $0xa0] sm:$0xff]
    %v103 = vld [vmem:[%s2 + $0xa8] sm:$0xff]
    %v104 = vld [vmem:[%s2 + $0xb0] sm:$0xff]
    %v105 = vld [vmem:[%s2 + $0xb8] sm:$0xff]
    %v106 = vld [vmem:[%s2 + $0xc0] sm:$0xff]
    %v107 = vld [vmem:[%s2 + $0xc8] sm:$0xff]
    %v108 = vld [vmem:[%s2 + $0xd0] sm:$0xff]
    %v109 = vld [vmem:[%s2 + $0xd8] sm:$0xff]
    %v110 = vld [vmem:[%s2 + $0xe0] sm:$0xff]
    %v111 = vld [vmem:[%s2 + $0xe8] sm:$0xff]
    %v112 = vld [vmem:[%s2 + $0xf0] sm:$0xff]
    %v113 = vld [vmem:[%s2 + $0xf8] sm:$0xff]
    %114 = vmatpush.msra.mxu0 %v97
    %115 = vmatpush.msra.mxu0 %v96
    %116 = vmatpush.msra.mxu0 %v95
    %117 = vmatpush.msra.mxu0 %v94
    %118 = vmatpush.msra.mxu0 %v93
    %119 = vmatpush.msra.mxu0 %v92
    %120 = vmatpush.msra.mxu0 %v91
    %121 = vmatpush.msra.mxu0 %v90
    %122 = vmatpush.msra.mxu0 %v89
    %123 = vmatpush.msra.mxu0 %v88
    %124 = vmatpush.msra.mxu0 %v87
    %125 = vmatpush.msra.mxu0 %v86
    %126 = vmatpush.msra.mxu0 %v85
    %127 = vmatpush.msra.mxu0 %v84
    %128 = vmatpush.msra.mxu0 %v83
    %129 = vmatpush.msra.mxu0 %v82
    %130 = vmatmul.f32.gmra.mxu0 %v78
    %v131 = vpop.f32.mrf.mxu0
    %v132 = vadd.f32 0.0, %v131
    %133 = vmatmul.f32.gmra.mxu0 %v80
    %v134 = vpop.f32.mrf.mxu0
    %v135 = vadd.f32 0.0, %v134
    %136 = vdwg.mxu0
    %137 = vmatpush.msra.mxu0 %v113
    %138 = vmatpush.msra.mxu0 %v112
    %139 = vmatpush.msra.mxu0 %v111
    %140 = vmatpush.msra.mxu0 %v110
    %141 = vmatpush.msra.mxu0 %v109
    %142 = vmatpush.msra.mxu0 %v108
    %143 = vmatpush.msra.mxu0 %v107
    %144 = vmatpush.msra.mxu0 %v106
    %145 = vmatpush.msra.mxu0 %v105
    %146 = vmatpush.msra.mxu0 %v104
    %147 = vmatpush.msra.mxu0 %v103
    %148 = vmatpush.msra.mxu0 %v102
    %149 = vmatpush.msra.mxu0 %v101
    %150 = vmatpush.msra.mxu0 %v100
    %151 = vmatpush.msra.mxu0 %v99
    %152 = vmatpush.msra.mxu0 %v98
    %153 = vmatmul.f32.gmra.mxu0 %v79
    %v154 = vpop.f32.mrf.mxu0
    %v155 = vadd.f32 %v132, %v154
    %156 = vmatmul.f32.gmra.mxu0 %v81
    %v157 = vpop.f32.mrf.mxu0
    %v158 = vadd.f32 %v135, %v157
    %159 = vdwg.mxu0
    %160 = vst.msk [vmem:[#allocation2] sm:$0xff] %vm25, %v155
    %161 = vst.msk [vmem:[#allocation2 + $0x8] sm:$0xff] %vm25, %v158
    // Predicated region
    $region14: #{tpu_custom_call.1} parent=1 // pred_check
      _
    $region15: #{tpu_custom_call.1} parent=1 // pred_check_branch
      %163 = sbr.rel (0) target = $region17
    $region16: #{tpu_custom_call.1} parent=1 // pred_region
      %165 = vsyncadd [#allocation3], 0
      %s166 = sshll.u32 [#allocation2], 4
      %s167 = int_to_ptr.vmem [resolvable:$true] %s166
      %s168 = sshll.u32 %s3, 4
      %s169 = int_to_ptr.hbm [resolvable:$true] %s168
      %174 = dma.vmem_to_hbm [thread:$0]  %s167, 256, %s169, [#allocation3], 128, 128, 8
    $region17: #{tpu_custom_call.1} parent=1 // pred_fallthru
      _
    // Predicated region
    $region18: #{tpu_custom_call.1} parent=1 // pred_check
      _
    $region19: #{tpu_custom_call.1} parent=1 // pred_check_branch
      %176 = sbr.rel (0) target = $region21
    $region20: #{tpu_custom_call.1} parent=1 // pred_region
      %178 = dma.done [#allocation3], 256
    $region21: #{tpu_custom_call.1} parent=1 // pred_fallthru
      _
    %179 = vsyncpa [#allocation3], 1

</llo_original>
